<compile_context>
chip_gen: v7x
topology: tpu7x:2x2x1
jax: 0.10.0
libtpu: 0.0.40
codegen_flags: <defaults>
</compile_context>

<pallas_src>
import functools

import jax
import jax.numpy as jnp
import numpy as np
from jax.experimental import pallas as pl
from jax.experimental.pallas import tpu as pltpu

INPUT_SIZE = 39
HIDDEN = 64
OUT_DIM = 2

GATE_PAD = 128   # each gate (i|f|g|o) owns a full 128-lane band
HPAD = 128       # h/c carried with 128 lanes (upper 64 stay zero)
OUT_PAD = 128    # head output padded to a full 128-lane dim (lane-dense store)
T_CHUNK = 4      # timesteps per grid step (use 32-128 for long sequences)


def lstm_head_kernel(xw_ref, whh_ref, wout_ref, bout_ref, out_ref,
                     h_scr, c_scr, *, seq_len, chunk):
    """One grid step processes `chunk` timesteps; h/c persist in VMEM scratch."""
    G = GATE_PAD
    step_idx = pl.program_id(0)

    @pl.when(step_idx == 0)
    def _():
        h_scr[...] = jnp.zeros_like(h_scr)
        c_scr[...] = jnp.zeros_like(c_scr)

    need_mask = (seq_len % chunk) != 0
    chunk_start = step_idx * chunk

    def step(t, carry):
        h, c = carry
        # Serial critical path: one bf16 MXU matmul (K=128, N=512) per step.
        # Input projection + bias already folded into xw_ref outside the loop.
        gates = xw_ref[t] + jnp.dot(h.astype(jnp.bfloat16), whh_ref[...],
                                    preferred_element_type=jnp.float32)
        i_g = jax.nn.sigmoid(gates[:, 0 * G:1 * G])   # 128-lane aligned bands
        f_g = jax.nn.sigmoid(gates[:, 1 * G:2 * G])
        g_g = jnp.tanh(gates[:, 2 * G:3 * G])
        o_g = jax.nn.sigmoid(gates[:, 3 * G:4 * G])
        c_new = f_g * c + i_g * g_g
        h_new = o_g * jnp.tanh(c_new)
        if need_mask:  # only emitted when T is not a multiple of the chunk
            keep = (chunk_start + t) < seq_len
            h_new = jnp.where(keep, h_new, h)
            c_new = jnp.where(keep, c_new, c)
        return h_new, c_new

    h, c = jax.lax.fori_loop(0, chunk, step, (h_scr[...], c_scr[...]),
                             unroll=True)  # bounded: trip count == T_CHUNK
    h_scr[...] = h
    c_scr[...] = c

    @pl.when(step_idx == pl.num_programs(0) - 1)
    def _():
        # Fused Linear head on the last hidden state, lane-dense (B_pad, 128).
        out_ref[...] = (jnp.dot(h, wout_ref[...],
                                preferred_element_type=jnp.float32)
                        + bout_ref[...])


def pack_params(w_ih, w_hh, b_ih, b_hh, w_out, b_out):
    """One-time repack of PyTorch-layout LSTM/Linear weights.

    w_ih: (4H, I), w_hh: (4H, H), b_ih/b_hh: (4H,)  (gate order i, f, g, o)
    w_out: (2, H), b_out: (2,)
    Returns:
      wih_p : (I, 4*128) f32   per-gate 128-lane bands (upper 64 lanes zero)
      b_p   : (1, 1, 4*128) f32 combined b_ih + b_hh in the same bands
      whh_p : (128, 4*128) bf16 rows 64..127 zero, same band structure
      wout_p: (128, 128) f32    rows 64..127 and cols 2..127 zero
      bout_p: (1, 128) f32
    """
    H, I = HIDDEN, INPUT_SIZE
    w_ih = jnp.asarray(w_ih, jnp.float32)
    w_hh = jnp.asarray(w_hh, jnp.float32)
    b = jnp.asarray(b_ih, jnp.float32) + jnp.asarray(b_hh, jnp.float32)

    wih_p = jnp.zeros((I, 4 * GATE_PAD), jnp.float32)
    whh_p = jnp.zeros((HPAD, 4 * GATE_PAD), jnp.float32)
    b_p = jnp.zeros((4 * GATE_PAD,), jnp.float32)
    for g in range(4):
        lo = g * GATE_PAD
        wih_p = wih_p.at[:, lo:lo + H].set(w_ih[g * H:(g + 1) * H, :].T)
        whh_p = whh_p.at[:H, lo:lo + H].set(w_hh[g * H:(g + 1) * H, :].T)
        b_p = b_p.at[lo:lo + H].set(b[g * H:(g + 1) * H])

    whh_p = whh_p.astype(jnp.bfloat16)          # bf16 operand for the MXU
    b_p = b_p.reshape(1, 1, 4 * GATE_PAD)

    wout_p = jnp.zeros((HPAD, OUT_PAD), jnp.float32).at[:H, :OUT_DIM].set(
        jnp.asarray(w_out, jnp.float32).T)
    bout_p = jnp.zeros((1, OUT_PAD), jnp.float32).at[0, :OUT_DIM].set(
        jnp.asarray(b_out, jnp.float32))
    return wih_p, b_p, whh_p, wout_p, bout_p


@jax.jit
def rnn_forward_packed(x, wih_p, b_p, whh_p, wout_p, bout_p):
    """x: (B, T, INPUT_SIZE) float32, packed params. Returns (B, 2) float32."""
    B, T, _ = x.shape

    # Hoisted input projection + bias: one big GEMM over all timesteps,
    # producing time-major, band-padded gate pre-activations directly from x
    # (no separate transpose/pad round trips of the activation tensor).
    xw = jnp.einsum('bti,ig->tbg', x, wih_p) + b_p        # (T, B, 512) f32

    B_pad = ((B + 7) // 8) * 8                             # sublane-align batch
    n_chunks = pl.cdiv(T, T_CHUNK)
    T_pad = n_chunks * T_CHUNK
    xw = jnp.pad(xw, ((0, T_pad - T), (0, B_pad - B), (0, 0)))

    out_padded = pl.pallas_call(
        functools.partial(lstm_head_kernel, seq_len=T, chunk=T_CHUNK),
        out_shape=jax.ShapeDtypeStruct((B_pad, OUT_PAD), jnp.float32),
        grid_spec=pltpu.PrefetchScalarGridSpec(
            num_scalar_prefetch=0,
            grid=(n_chunks,),
            in_specs=[
                pl.BlockSpec((T_CHUNK, B_pad, 4 * GATE_PAD),
                             lambda g: (g, 0, 0)),          # xw streamed per chunk
                pl.BlockSpec((HPAD, 4 * GATE_PAD), lambda g: (0, 0)),  # W_hh (bf16)
                pl.BlockSpec((HPAD, OUT_PAD), lambda g: (0, 0)),       # head weight
                pl.BlockSpec((1, OUT_PAD), lambda g: (0, 0)),          # head bias
            ],
            out_specs=pl.BlockSpec((B_pad, OUT_PAD), lambda g: (0, 0)),
            scratch_shapes=[
                pltpu.VMEM((B_pad, HPAD), jnp.float32),      # h carried across chunks
                pltpu.VMEM((B_pad, HPAD), jnp.float32),      # c carried across chunks
            ],
        ),
        compiler_params=pltpu.CompilerParams(
            dimension_semantics=("arbitrary",)),             # time is serial
    )(xw, whh_p, wout_p, bout_p)

    return out_padded[:B, :OUT_DIM]


def rnn_forward(x, w_ih, w_hh, b_ih, b_hh, w_out, b_out):
    """Convenience wrapper: packs raw PyTorch-layout params then runs kernel."""
    return rnn_forward_packed(x, *pack_params(w_ih, w_hh, b_ih, b_hh,
                                              w_out, b_out))


def rnn_forward_ref(x, w_ih, w_hh, b_ih, b_hh, w_out, b_out):
    """Pure-JAX f32 reference of the PyTorch LSTM + Linear head."""
    B, T, _ = x.shape
    H = HIDDEN

    def step(carry, xt):
        h, c = carry
        gates = xt @ w_ih.T + b_ih + h @ w_hh.T + b_hh        # (B, 4H)
        i_g = jax.nn.sigmoid(gates[:, 0:H])
        f_g = jax.nn.sigmoid(gates[:, H:2 * H])
        g_g = jnp.tanh(gates[:, 2 * H:3 * H])
        o_g = jax.nn.sigmoid(gates[:, 3 * H:4 * H])
        c_new = f_g * c + i_g * g_g
        h_new = o_g * jnp.tanh(c_new)
        return (h_new, c_new), None

    h0 = jnp.zeros((B, H), jnp.float32)
    c0 = jnp.zeros((B, H), jnp.float32)
    (h_T, _), _ = jax.lax.scan(step, (h0, c0), jnp.transpose(x, (1, 0, 2)))
    return h_T @ w_out.T + b_out


def make_params(key):
    """Deterministic params matching PyTorch LSTM/Linear shapes & init scale."""
    H, I = HIDDEN, INPUT_SIZE
    k = jax.random.split(key, 6)
    s = 1.0 / np.sqrt(H)
    w_ih = jax.random.uniform(k[0], (4 * H, I), jnp.float32, -s, s)
    w_hh = jax.random.uniform(k[1], (4 * H, H), jnp.float32, -s, s)
    b_ih = jax.random.uniform(k[2], (4 * H,), jnp.float32, -s, s)
    b_hh = jax.random.uniform(k[3], (4 * H,), jnp.float32, -s, s)
    w_out = jax.random.uniform(k[4], (OUT_DIM, H), jnp.float32, -s, s)
    b_out = jax.random.uniform(k[5], (OUT_DIM,), jnp.float32, -s, s)
    return w_ih, w_hh, b_ih, b_hh, w_out, b_out


if __name__ == "__main__":
    key = jax.random.PRNGKey(0)
    k_x, k_x2, k_p = jax.random.split(key, 3)
    params = make_params(k_p)
    packed = pack_params(*params)     # pack weights ONCE, outside the jit

    # Case 1: T a multiple of T_CHUNK (grid=(2,), exercises h/c scratch carry).
    B, T = 2, 8
    x = jax.random.normal(k_x, (B, T, INPUT_SIZE), jnp.float32)
    out = jax.block_until_ready(rnn_forward_packed(x, *packed))
    ref = rnn_forward_ref(x, *params)
    np.testing.assert_allclose(np.asarray(out), np.asarray(ref),
                               rtol=2e-2, atol=2e-2)  # bf16 recurrent matmul
    assert out.shape == (B, OUT_DIM) and out.dtype == jnp.float32

    # Case 2: ragged T (exercises the masked-tail path).
    T2 = 6
    x2 = jax.random.normal(k_x2, (B, T2, INPUT_SIZE), jnp.float32)
    out2 = jax.block_until_ready(rnn_forward_packed(x2, *packed))
    ref2 = rnn_forward_ref(x2, *params)
    np.testing.assert_allclose(np.asarray(out2), np.asarray(ref2),
                               rtol=2e-2, atol=2e-2)

    print("KERNEL_OK")
</pallas_src>

<mosaic_0001>
module attributes {stable_mosaic.version = 11 : i64} {
  func.func @lstm_head_kernel(%arg0: i32, %arg1: memref<4x8x512xf32, #tpu.memory_space<vmem>>, %arg2: memref<128x512xbf16, #tpu.memory_space<vmem>>, %arg3: memref<128x128xf32, #tpu.memory_space<vmem>>, %arg4: memref<1x128xf32, #tpu.memory_space<vmem>>, %arg5: memref<8x128xf32, #tpu.memory_space<vmem>>, %arg6: memref<8x128xf32, #tpu.memory_space<vmem>>, %arg7: memref<8x128xf32, #tpu.memory_space<vmem>>) attributes {dimension_semantics = [#tpu.dimension_semantics<arbitrary>], iteration_bounds = array<i64: 2>, scalar_prefetch = 0 : i64, scratch_operands = 2 : i64, tpu.core_type = #tpu.core_type<tc>, window_params = [{transform_indices = @transform_0, window_bounds = array<i64: 4, 8, 512>}, {pipeline_mode = #tpu.pipeline_mode<synchronous>, transform_indices = @transform_1, window_bounds = array<i64: 128, 512>}, {pipeline_mode = #tpu.pipeline_mode<synchronous>, transform_indices = @transform_2, window_bounds = array<i64: 128, 128>}, {pipeline_mode = #tpu.pipeline_mode<synchronous>, transform_indices = @transform_3, window_bounds = array<i64: 1, 128>}, {pipeline_mode = #tpu.pipeline_mode<synchronous>, transform_indices = @transform_4, window_bounds = array<i64: 8, 128>}]} {
    %c0_i32 = arith.constant 0 : i32
    %0 = arith.cmpi eq, %arg0, %c0_i32 : i32
    %1 = arith.extui %0 : i1 to i32
    %c0_i32_0 = arith.constant 0 : i32
    %2 = arith.cmpi ne, %1, %c0_i32_0 : i32
    scf.if %2 {
      %cst_42 = arith.constant 0.000000e+00 : f32
      %138 = vector.broadcast %cst_42 : f32 to vector<8x128xf32>
      %c0_43 = arith.constant 0 : index
      %c0_44 = arith.constant 0 : index
      %139 = vector.load %arg6[%c0_43, %c0_44] : memref<8x128xf32, #tpu.memory_space<vmem>>, vector<8x128xf32>
      tpu.vector_store %arg6[%c0_43, %c0_44], %138 {strides = array<i32>} : memref<8x128xf32, #tpu.memory_space<vmem>>, vector<8x128xf32>,
      %cst_45 = arith.constant 0.000000e+00 : f32
      %140 = vector.broadcast %cst_45 : f32 to vector<8x128xf32>
      %c0_46 = arith.constant 0 : index
      %c0_47 = arith.constant 0 : index
      %141 = vector.load %arg7[%c0_46, %c0_47] : memref<8x128xf32, #tpu.memory_space<vmem>>, vector<8x128xf32>
      tpu.vector_store %arg7[%c0_46, %c0_47], %140 {strides = array<i32>} : memref<8x128xf32, #tpu.memory_space<vmem>>, vector<8x128xf32>,
    } else {
    }
    %c0 = arith.constant 0 : index
    %c0_1 = arith.constant 0 : index
    %3 = vector.load %arg6[%c0, %c0_1] : memref<8x128xf32, #tpu.memory_space<vmem>>, vector<8x128xf32>
    %c0_2 = arith.constant 0 : index
    %c0_3 = arith.constant 0 : index
    %4 = vector.load %arg7[%c0_2, %c0_3] : memref<8x128xf32, #tpu.memory_space<vmem>>, vector<8x128xf32>
    %c0_i32_4 = arith.constant 0 : i32
    %5 = arith.index_cast %c0_i32_4 : i32 to index
    %c0_5 = arith.constant 0 : index
    %c0_6 = arith.constant 0 : index
    %6 = vector.load %arg1[%5, %c0_5, %c0_6] : memref<4x8x512xf32, #tpu.memory_space<vmem>>, vector<1x8x512xf32>
    %7 = vector.shape_cast %6 : vector<1x8x512xf32> to vector<8x512xf32>
    %8 = arith.truncf %3 : vector<8x128xf32> to vector<8x128xbf16>
    %c0_7 = arith.constant 0 : index
    %c0_8 = arith.constant 0 : index
    %9 = vector.load %arg2[%c0_7, %c0_8] : memref<128x512xbf16, #tpu.memory_space<vmem>>, vector<128x512xbf16>
    %cst = arith.constant dense<0.000000e+00> : vector<8x512xf32>
    %10 = tpu.matmul %8, %9, %cst {dimension_numbers = #tpu.dot_dimension_numbers<[1], [0], [0], [1], [0, 0, 1, 1], [], []>} : vector<8x128xbf16>, vector<128x512xbf16>, vector<8x512xf32> -> vector<8x512xf32>
    %11 = arith.addf %7, %10 : vector<8x512xf32>
    %12 = vector.extract_strided_slice %11 {offsets = [0, 0], sizes = [8, 128], strides = [1, 1]} : vector<8x512xf32> to vector<8x128xf32>
    %13 = arith.negf %12 : vector<8x128xf32>
    %14 = math.exp %13 : vector<8x128xf32>
    %cst_9 = arith.constant 1.000000e+00 : f32
    %15 = vector.broadcast %cst_9 : f32 to vector<8x128xf32>
    %16 = arith.addf %15, %14 : vector<8x128xf32>
    %17 = arith.divf %15, %16 : vector<8x128xf32>
    %18 = vector.extract_strided_slice %11 {offsets = [0, 128], sizes = [8, 128], strides = [1, 1]} : vector<8x512xf32> to vector<8x128xf32>
    %19 = arith.negf %18 : vector<8x128xf32>
    %20 = math.exp %19 : vector<8x128xf32>
    %cst_10 = arith.constant 1.000000e+00 : f32
    %21 = vector.broadcast %cst_10 : f32 to vector<8x128xf32>
    %22 = arith.addf %21, %20 : vector<8x128xf32>
    %23 = arith.divf %21, %22 : vector<8x128xf32>
    %24 = vector.extract_strided_slice %11 {offsets = [0, 256], sizes = [8, 128], strides = [1, 1]} : vector<8x512xf32> to vector<8x128xf32>
    %25 = math.tanh %24 : vector<8x128xf32>
    %26 = vector.extract_strided_slice %11 {offsets = [0, 384], sizes = [8, 128], strides = [1, 1]} : vector<8x512xf32> to vector<8x128xf32>
    %27 = arith.negf %26 : vector<8x128xf32>
    %28 = math.exp %27 : vector<8x128xf32>
    %cst_11 = arith.constant 1.000000e+00 : f32
    %29 = vector.broadcast %cst_11 : f32 to vector<8x128xf32>
    %30 = arith.addf %29, %28 : vector<8x128xf32>
    %31 = arith.divf %29, %30 : vector<8x128xf32>
    %32 = arith.mulf %23, %4 : vector<8x128xf32>
    %33 = arith.mulf %17, %25 : vector<8x128xf32>
    %34 = arith.addf %32, %33 : vector<8x128xf32>
    %35 = math.tanh %34 : vector<8x128xf32>
    %36 = arith.mulf %31, %35 : vector<8x128xf32>
    %c1_i32 = arith.constant 1 : i32
    %37 = arith.index_cast %c1_i32 : i32 to index
    %c0_12 = arith.constant 0 : index
    %c0_13 = arith.constant 0 : index
    %38 = vector.load %arg1[%37, %c0_12, %c0_13] : memref<4x8x512xf32, #tpu.memory_space<vmem>>, vector<1x8x512xf32>
    %39 = vector.shape_cast %38 : vector<1x8x512xf32> to vector<8x512xf32>
    %40 = arith.truncf %36 : vector<8x128xf32> to vector<8x128xbf16>
    %c0_14 = arith.constant 0 : index
    %c0_15 = arith.constant 0 : index
    %41 = vector.load %arg2[%c0_14, %c0_15] : memref<128x512xbf16, #tpu.memory_space<vmem>>, vector<128x512xbf16>
    %cst_16 = arith.constant dense<0.000000e+00> : vector<8x512xf32>
    %42 = tpu.matmul %40, %41, %cst_16 {dimension_numbers = #tpu.dot_dimension_numbers<[1], [0], [0], [1], [0, 0, 1, 1], [], []>} : vector<8x128xbf16>, vector<128x512xbf16>, vector<8x512xf32> -> vector<8x512xf32>
    %43 = arith.addf %39, %42 : vector<8x512xf32>
    %44 = vector.extract_strided_slice %43 {offsets = [0, 0], sizes = [8, 128], strides = [1, 1]} : vector<8x512xf32> to vector<8x128xf32>
    %45 = arith.negf %44 : vector<8x128xf32>
    %46 = math.exp %45 : vector<8x128xf32>
    %cst_17 = arith.constant 1.000000e+00 : f32
    %47 = vector.broadcast %cst_17 : f32 to vector<8x128xf32>
    %48 = arith.addf %47, %46 : vector<8x128xf32>
    %49 = arith.divf %47, %48 : vector<8x128xf32>
    %50 = vector.extract_strided_slice %43 {offsets = [0, 128], sizes = [8, 128], strides = [1, 1]} : vector<8x512xf32> to vector<8x128xf32>
    %51 = arith.negf %50 : vector<8x128xf32>
    %52 = math.exp %51 : vector<8x128xf32>
    %cst_18 = arith.constant 1.000000e+00 : f32
    %53 = vector.broadcast %cst_18 : f32 to vector<8x128xf32>
    %54 = arith.addf %53, %52 : vector<8x128xf32>
    %55 = arith.divf %53, %54 : vector<8x128xf32>
    %56 = vector.extract_strided_slice %43 {offsets = [0, 256], sizes = [8, 128], strides = [1, 1]} : vector<8x512xf32> to vector<8x128xf32>
    %57 = math.tanh %56 : vector<8x128xf32>
    %58 = vector.extract_strided_slice %43 {offsets = [0, 384], sizes = [8, 128], strides = [1, 1]} : vector<8x512xf32> to vector<8x128xf32>
    %59 = arith.negf %58 : vector<8x128xf32>
    %60 = math.exp %59 : vector<8x128xf32>
    %cst_19 = arith.constant 1.000000e+00 : f32
    %61 = vector.broadcast %cst_19 : f32 to vector<8x128xf32>
    %62 = arith.addf %61, %60 : vector<8x128xf32>
    %63 = arith.divf %61, %62 : vector<8x128xf32>
    %64 = arith.mulf %55, %34 : vector<8x128xf32>
    %65 = arith.mulf %49, %57 : vector<8x128xf32>
    %66 = arith.addf %64, %65 : vector<8x128xf32>
    %67 = math.tanh %66 : vector<8x128xf32>
    %68 = arith.mulf %63, %67 : vector<8x128xf32>
    %c2_i32 = arith.constant 2 : i32
    %69 = arith.index_cast %c2_i32 : i32 to index
    %c0_20 = arith.constant 0 : index
    %c0_21 = arith.constant 0 : index
    %70 = vector.load %arg1[%69, %c0_20, %c0_21] : memref<4x8x512xf32, #tpu.memory_space<vmem>>, vector<1x8x512xf32>
    %71 = vector.shape_cast %70 : vector<1x8x512xf32> to vector<8x512xf32>
    %72 = arith.truncf %68 : vector<8x128xf32> to vector<8x128xbf16>
    %c0_22 = arith.constant 0 : index
    %c0_23 = arith.constant 0 : index
    %73 = vector.load %arg2[%c0_22, %c0_23] : memref<128x512xbf16, #tpu.memory_space<vmem>>, vector<128x512xbf16>
    %cst_24 = arith.constant dense<0.000000e+00> : vector<8x512xf32>
    %74 = tpu.matmul %72, %73, %cst_24 {dimension_numbers = #tpu.dot_dimension_numbers<[1], [0], [0], [1], [0, 0, 1, 1], [], []>} : vector<8x128xbf16>, vector<128x512xbf16>, vector<8x512xf32> -> vector<8x512xf32>
    %75 = arith.addf %71, %74 : vector<8x512xf32>
    %76 = vector.extract_strided_slice %75 {offsets = [0, 0], sizes = [8, 128], strides = [1, 1]} : vector<8x512xf32> to vector<8x128xf32>
    %77 = arith.negf %76 : vector<8x128xf32>
    %78 = math.exp %77 : vector<8x128xf32>
    %cst_25 = arith.constant 1.000000e+00 : f32
    %79 = vector.broadcast %cst_25 : f32 to vector<8x128xf32>
    %80 = arith.addf %79, %78 : vector<8x128xf32>
    %81 = arith.divf %79, %80 : vector<8x128xf32>
    %82 = vector.extract_strided_slice %75 {offsets = [0, 128], sizes = [8, 128], strides = [1, 1]} : vector<8x512xf32> to vector<8x128xf32>
    %83 = arith.negf %82 : vector<8x128xf32>
    %84 = math.exp %83 : vector<8x128xf32>
    %cst_26 = arith.constant 1.000000e+00 : f32
    %85 = vector.broadcast %cst_26 : f32 to vector<8x128xf32>
    %86 = arith.addf %85, %84 : vector<8x128xf32>
    %87 = arith.divf %85, %86 : vector<8x128xf32>
    %88 = vector.extract_strided_slice %75 {offsets = [0, 256], sizes = [8, 128], strides = [1, 1]} : vector<8x512xf32> to vector<8x128xf32>
    %89 = math.tanh %88 : vector<8x128xf32>
    %90 = vector.extract_strided_slice %75 {offsets = [0, 384], sizes = [8, 128], strides = [1, 1]} : vector<8x512xf32> to vector<8x128xf32>
    %91 = arith.negf %90 : vector<8x128xf32>
    %92 = math.exp %91 : vector<8x128xf32>
    %cst_27 = arith.constant 1.000000e+00 : f32
    %93 = vector.broadcast %cst_27 : f32 to vector<8x128xf32>
    %94 = arith.addf %93, %92 : vector<8x128xf32>
    %95 = arith.divf %93, %94 : vector<8x128xf32>
    %96 = arith.mulf %87, %66 : vector<8x128xf32>
    %97 = arith.mulf %81, %89 : vector<8x128xf32>
    %98 = arith.addf %96, %97 : vector<8x128xf32>
    %99 = math.tanh %98 : vector<8x128xf32>
    %100 = arith.mulf %95, %99 : vector<8x128xf32>
    %c3_i32 = arith.constant 3 : i32
    %101 = arith.index_cast %c3_i32 : i32 to index
    %c0_28 = arith.constant 0 : index
    %c0_29 = arith.constant 0 : index
    %102 = vector.load %arg1[%101, %c0_28, %c0_29] : memref<4x8x512xf32, #tpu.memory_space<vmem>>, vector<1x8x512xf32>
    %103 = vector.shape_cast %102 : vector<1x8x512xf32> to vector<8x512xf32>
    %104 = arith.truncf %100 : vector<8x128xf32> to vector<8x128xbf16>
    %c0_30 = arith.constant 0 : index
    %c0_31 = arith.constant 0 : index
    %105 = vector.load %arg2[%c0_30, %c0_31] : memref<128x512xbf16, #tpu.memory_space<vmem>>, vector<128x512xbf16>
    %cst_32 = arith.constant dense<0.000000e+00> : vector<8x512xf32>
    %106 = tpu.matmul %104, %105, %cst_32 {dimension_numbers = #tpu.dot_dimension_numbers<[1], [0], [0], [1], [0, 0, 1, 1], [], []>} : vector<8x128xbf16>, vector<128x512xbf16>, vector<8x512xf32> -> vector<8x512xf32>
    %107 = arith.addf %103, %106 : vector<8x512xf32>
    %108 = vector.extract_strided_slice %107 {offsets = [0, 0], sizes = [8, 128], strides = [1, 1]} : vector<8x512xf32> to vector<8x128xf32>
    %109 = arith.negf %108 : vector<8x128xf32>
    %110 = math.exp %109 : vector<8x128xf32>
    %cst_33 = arith.constant 1.000000e+00 : f32
    %111 = vector.broadcast %cst_33 : f32 to vector<8x128xf32>
    %112 = arith.addf %111, %110 : vector<8x128xf32>
    %113 = arith.divf %111, %112 : vector<8x128xf32>
    %114 = vector.extract_strided_slice %107 {offsets = [0, 128], sizes = [8, 128], strides = [1, 1]} : vector<8x512xf32> to vector<8x128xf32>
    %115 = arith.negf %114 : vector<8x128xf32>
    %116 = math.exp %115 : vector<8x128xf32>
    %cst_34 = arith.constant 1.000000e+00 : f32
    %117 = vector.broadcast %cst_34 : f32 to vector<8x128xf32>
    %118 = arith.addf %117, %116 : vector<8x128xf32>
    %119 = arith.divf %117, %118 : vector<8x128xf32>
    %120 = vector.extract_strided_slice %107 {offsets = [0, 256], sizes = [8, 128], strides = [1, 1]} : vector<8x512xf32> to vector<8x128xf32>
    %121 = math.tanh %120 : vector<8x128xf32>
    %122 = vector.extract_strided_slice %107 {offsets = [0, 384], sizes = [8, 128], strides = [1, 1]} : vector<8x512xf32> to vector<8x128xf32>
    %123 = arith.negf %122 : vector<8x128xf32>
    %124 = math.exp %123 : vector<8x128xf32>
    %cst_35 = arith.constant 1.000000e+00 : f32
    %125 = vector.broadcast %cst_35 : f32 to vector<8x128xf32>
    %126 = arith.addf %125, %124 : vector<8x128xf32>
    %127 = arith.divf %125, %126 : vector<8x128xf32>
    %128 = arith.mulf %119, %98 : vector<8x128xf32>
    %129 = arith.mulf %113, %121 : vector<8x128xf32>
    %130 = arith.addf %128, %129 : vector<8x128xf32>
    %131 = math.tanh %130 : vector<8x128xf32>
    %132 = arith.mulf %127, %131 : vector<8x128xf32>
    %c4_i32 = arith.constant 4 : i32
    %c0_36 = arith.constant 0 : index
    %c0_37 = arith.constant 0 : index
    %133 = vector.load %arg6[%c0_36, %c0_37] : memref<8x128xf32, #tpu.memory_space<vmem>>, vector<8x128xf32>
    tpu.vector_store %arg6[%c0_36, %c0_37], %132 {strides = array<i32>} : memref<8x128xf32, #tpu.memory_space<vmem>>, vector<8x128xf32>,
    %c0_38 = arith.constant 0 : index
    %c0_39 = arith.constant 0 : index
    %134 = vector.load %arg7[%c0_38, %c0_39] : memref<8x128xf32, #tpu.memory_space<vmem>>, vector<8x128xf32>
    tpu.vector_store %arg7[%c0_38, %c0_39], %130 {strides = array<i32>} : memref<8x128xf32, #tpu.memory_space<vmem>>, vector<8x128xf32>,
    %c1_i32_40 = arith.constant 1 : i32
    %135 = arith.cmpi eq, %arg0, %c1_i32_40 : i32
    %136 = arith.extui %135 : i1 to i32
    %c0_i32_41 = arith.constant 0 : i32
    %137 = arith.cmpi ne, %136, %c0_i32_41 : i32
    scf.if %137 {
      %c0_42 = arith.constant 0 : index
      %c0_43 = arith.constant 0 : index
      %138 = vector.load %arg3[%c0_42, %c0_43] : memref<128x128xf32, #tpu.memory_space<vmem>>, vector<128x128xf32>
      %cst_44 = arith.constant dense<0.000000e+00> : vector<8x128xf32>
      %139 = tpu.matmul %132, %138, %cst_44 {dimension_numbers = #tpu.dot_dimension_numbers<[1], [0], [0], [1], [0, 0, 1, 1], [], []>} : vector<8x128xf32>, vector<128x128xf32>, vector<8x128xf32> -> vector<8x128xf32>
      %c0_45 = arith.constant 0 : index
      %c0_46 = arith.constant 0 : index
      %140 = vector.load %arg4[%c0_45, %c0_46] : memref<1x128xf32, #tpu.memory_space<vmem>>, vector<1x128xf32>
      %141 = vector.broadcast %140 : vector<1x128xf32> to vector<8x128xf32>
      %142 = arith.addf %139, %141 : vector<8x128xf32>
      %c0_47 = arith.constant 0 : index
      %c0_48 = arith.constant 0 : index
      %143 = vector.load %arg5[%c0_47, %c0_48] : memref<8x128xf32, #tpu.memory_space<vmem>>, vector<8x128xf32>
      tpu.vector_store %arg5[%c0_47, %c0_48], %142 {strides = array<i32>} : memref<8x128xf32, #tpu.memory_space<vmem>>, vector<8x128xf32>,
    } else {
    }
    return
  }
  func.func @transform_0(%arg0: i32) -> (i32, i32, i32) {
    %c0_i32 = arith.constant 0 : i32
    %c0_i32_0 = arith.constant 0 : i32
    %c0_i32_1 = arith.constant 0 : i32
    return %arg0, %c0_i32, %c0_i32_0 : i32, i32, i32
  }
  func.func @transform_1(%arg0: i32) -> (i32, i32) {
    %c0_i32 = arith.constant 0 : i32
    %c0_i32_0 = arith.constant 0 : i32
    %c0_i32_1 = arith.constant 0 : i32
    return %c0_i32, %c0_i32_0 : i32, i32
  }
  func.func @transform_2(%arg0: i32) -> (i32, i32) {
    %c0_i32 = arith.constant 0 : i32
    %c0_i32_0 = arith.constant 0 : i32
    %c0_i32_1 = arith.constant 0 : i32
    return %c0_i32, %c0_i32_0 : i32, i32
  }
  func.func @transform_3(%arg0: i32) -> (i32, i32) {
    %c0_i32 = arith.constant 0 : i32
    %c0_i32_0 = arith.constant 0 : i32
    %c0_i32_1 = arith.constant 0 : i32
    return %c0_i32, %c0_i32_0 : i32, i32
  }
  func.func @transform_4(%arg0: i32) -> (i32, i32) {
    %c0_i32 = arith.constant 0 : i32
    %c0_i32_0 = arith.constant 0 : i32
    %c0_i32_1 = arith.constant 0 : i32
    return %c0_i32, %c0_i32_0 : i32, i32
  }
}

</mosaic_0001>

<llo_original>
// kernel: rnn_forward_packed.1
$region0: #{rnn_forward_packed.1}
  #allocation0 [shape = 'u32[]', space=smem, size = 0x4, offset = 0x4, fixed_abs, tag = 'smem constant byte address 0x4 - core index']
  #allocation1 [shape = 'u32[144,128]{1,0:T(1,128)}', space=vmem, size = 0x12000, scoped, tag = 'internal scratch']
  #allocation2 [shape = 'f32[8,128]{1,0:T(8,128)}', space=vmem, size = 0x1000, scoped, tag = 'scratch operand']
  #allocation3 [shape = 'f32[8,128]{1,0:T(8,128)}', space=vmem, size = 0x1000, scoped, tag = 'scratch operand']
  %s0 = inlined_call_operand.vmem [shape: f32[8,8,512], index: 0, kind: input, shape index: {}]
  %s1 = inlined_call_operand.vmem [shape: bf16[128,512], index: 1, kind: input, shape index: {}]
  %s2 = inlined_call_operand.vmem [shape: f32[128,128], index: 2, kind: input, shape index: {}]
  %s3 = inlined_call_operand.vmem [shape: f32[1,128], index: 3, kind: input, shape index: {}]
  %s4 = inlined_call_operand.vmem [shape: f32[8,128], index: 4, kind: output, shape index: {}]
  %s5 = sld [smem:[#allocation0]]
  $region57: #{rnn_forward_packed.1} parent=0
    _
  %s7 = ssub.s32 1, %s5
  %s8 = scalar_select 0, %s7, %s5
  loop: start=0, step=1, limit=4
  $region2: #{rnn_forward_packed.1} parent=0 // loop_pre_header
    _
  $region3: #{rnn_forward_packed.1} parent=0 // loop_header
    %s10 = sphi 0, %s14
    %p11 = scmp.ge.s32.totalorder %s10, 4
    %s20 = sphi 0, %s22
    %s23 = sphi 0, %s20
    %s24 = sphi 0, %s23
    %s40 = sphi 0, %s24
    %s44 = sphi 0, %s44
    %s46 = sphi 0, %s44
    %s47 = sphi 0, %s46
    %s61 = sphi 0, %s47
    %s65 = sphi 0, %s65
    %s67 = sphi 0, %s65
    %s68 = sphi 0, %s67
    %s82 = sphi 0, %s68
    %s86 = sphi 0, %s86
    %s88 = sphi 0, %s86
    %s89 = sphi 0, %s88
    %s103 = sphi 0, %s89
    %s107 = sphi 0, %s107
    %s109 = sphi 0, %s107
    %s110 = sphi 0, %s109
    %s124 = sphi 0, %s110
  $region4: #{rnn_forward_packed.1} parent=0 // loop_header_branch
    %13 = sbr.rel (%p11) target = $region8
  $region5: #{rnn_forward_packed.1} parent=0 // loop_body
    %s15 = ssub.s32 %s10, 1
    %s16 = ssub.s32 %s10, 2
    %s17 = sadd.s32 %s10, 1
    %s18 = ssub.s32 %s10, %s17
    %p19 = scmp.eq.s32.totalorder %s18, 0
    %s21 = sadd.s32 %s20, 1
    %s22 = scalar_select %p19, %s20, %s21
    %p25 = pneg %p19
    %p26 = scmp.eq.s32.totalorder %s10, 1
    %p27 = por %p25, %p26
    %p28 = scmp.ne.s32.totalorder %s20, %s23
    %p29 = scmp.eq.s32.totalorder %s10, 0
    %p30 = por %p28, %p29
    %p31 = scmp.ne.s32.totalorder %s20, %s23
    %p32 = scmp.eq.s32.totalorder %s15, 1
    %p33 = por %p31, %p32
    %p34 = scmp.ne.s32.totalorder %s23, %s24
    %p35 = scmp.eq.s32.totalorder %s15, 0
    %p36 = por %p34, %p35
    %p37 = scmp.ne.s32.totalorder %s23, %s24
    %p38 = scmp.eq.s32.totalorder %s16, 1
    %p39 = por %p37, %p38
    %p41 = scmp.ne.s32.totalorder %s24, %s40
    %p42 = scmp.eq.s32.totalorder %s16, 0
    %p43 = por %p41, %p42
    %s45 = sadd.s32 %s44, 1
    %p48 = scmp.eq.s32.totalorder %s10, 1
    %p49 = scmp.ne.s32.totalorder %s44, %s46
    %p50 = scmp.eq.s32.totalorder %s10, 0
    %p51 = por %p49, %p50
    %p52 = scmp.ne.s32.totalorder %s44, %s46
    %p53 = scmp.eq.s32.totalorder %s15, 1
    %p54 = por %p52, %p53
    %p55 = scmp.ne.s32.totalorder %s46, %s47
    %p56 = scmp.eq.s32.totalorder %s15, 0
    %p57 = por %p55, %p56
    %p58 = scmp.ne.s32.totalorder %s46, %s47
    %p59 = scmp.eq.s32.totalorder %s16, 1
    %p60 = por %p58, %p59
    %p62 = scmp.ne.s32.totalorder %s47, %s61
    %p63 = scmp.eq.s32.totalorder %s16, 0
    %p64 = por %p62, %p63
    %s66 = sadd.s32 %s65, 1
    %p69 = scmp.eq.s32.totalorder %s10, 1
    %p70 = scmp.ne.s32.totalorder %s65, %s67
    %p71 = scmp.eq.s32.totalorder %s10, 0
    %p72 = por %p70, %p71
    %p73 = scmp.ne.s32.totalorder %s65, %s67
    %p74 = scmp.eq.s32.totalorder %s15, 1
    %p75 = por %p73, %p74
    %p76 = scmp.ne.s32.totalorder %s67, %s68
    %p77 = scmp.eq.s32.totalorder %s15, 0
    %p78 = por %p76, %p77
    %p79 = scmp.ne.s32.totalorder %s67, %s68
    %p80 = scmp.eq.s32.totalorder %s16, 1
    %p81 = por %p79, %p80
    %p83 = scmp.ne.s32.totalorder %s68, %s82
    %p84 = scmp.eq.s32.totalorder %s16, 0
    %p85 = por %p83, %p84
    %s87 = sadd.s32 %s86, 1
    %p90 = scmp.eq.s32.totalorder %s10, 1
    %p91 = scmp.ne.s32.totalorder %s86, %s88
    %p92 = scmp.eq.s32.totalorder %s10, 0
    %p93 = por %p91, %p92
    %p94 = scmp.ne.s32.totalorder %s86, %s88
    %p95 = scmp.eq.s32.totalorder %s15, 1
    %p96 = por %p94, %p95
    %p97 = scmp.ne.s32.totalorder %s88, %s89
    %p98 = scmp.eq.s32.totalorder %s15, 0
    %p99 = por %p97, %p98
    %p100 = scmp.ne.s32.totalorder %s88, %s89
    %p101 = scmp.eq.s32.totalorder %s16, 1
    %p102 = por %p100, %p101
    %p104 = scmp.ne.s32.totalorder %s89, %s103
    %p105 = scmp.eq.s32.totalorder %s16, 0
    %p106 = por %p104, %p105
    %s108 = sadd.s32 %s107, 1
    %p111 = scmp.eq.s32.totalorder %s10, 1
    %p112 = scmp.ne.s32.totalorder %s107, %s109
    %p113 = scmp.eq.s32.totalorder %s10, 0
    %p114 = por %p112, %p113
    %p115 = scmp.ne.s32.totalorder %s107, %s109
    %p116 = scmp.eq.s32.totalorder %s15, 1
    %p117 = por %p115, %p116
    %p118 = scmp.ne.s32.totalorder %s109, %s110
    %p119 = scmp.eq.s32.totalorder %s15, 0
    %p120 = por %p118, %p119
    %p121 = scmp.ne.s32.totalorder %s109, %s110
    %p122 = scmp.eq.s32.totalorder %s16, 1
    %p123 = por %p121, %p122
    %p125 = scmp.ne.s32.totalorder %s110, %s124
    %p126 = scmp.eq.s32.totalorder %s16, 0
    %p127 = por %p125, %p126
    %p128 = scmp.le.s32.totalorder 1, %s10
    %p129 = scmp.lt.s32.totalorder %s10, 3
    %p130 = pnand %p128, %p129
    %p131 = pneg %p130
    // Predicated region
    $region9: #{rnn_forward_packed.1} parent=5 // pred_check
      _
    $region10: #{rnn_forward_packed.1} parent=5 // pred_check_branch
      %133 = sbr.rel (%p130) target = $region12
    $region11: #{rnn_forward_packed.1} parent=5 // pred_region
      %s134 = ssub.s32 %s10, 1
      // Predicated region
      $region13: #{rnn_forward_packed.1} parent=11 // pred_check
        %p135 = pneg %p57
      $region14: #{rnn_forward_packed.1} parent=11 // pred_check_branch
        %137 = sbr.rel (%p135) target = $region16
      $region15: #{rnn_forward_packed.1} parent=11 // pred_region
        _
      $region16: #{rnn_forward_packed.1} parent=11 // pred_fallthru
        _
      // Predicated region
      $region17: #{rnn_forward_packed.1} parent=11 // pred_check
        %p138 = pneg %p78
      $region18: #{rnn_forward_packed.1} parent=11 // pred_check_branch
        %140 = sbr.rel (%p138) target = $region20
      $region19: #{rnn_forward_packed.1} parent=11 // pred_region
        _
      $region20: #{rnn_forward_packed.1} parent=11 // pred_fallthru
        _
      // Predicated region
      $region21: #{rnn_forward_packed.1} parent=11 // pred_check
        %p141 = pneg %p99
      $region22: #{rnn_forward_packed.1} parent=11 // pred_check_branch
        %143 = sbr.rel (%p141) target = $region24
      $region23: #{rnn_forward_packed.1} parent=11 // pred_region
        _
      $region24: #{rnn_forward_packed.1} parent=11 // pred_fallthru
        _
    $region12: #{rnn_forward_packed.1} parent=5 // pred_fallthru
      _
    %p144 = scmp.lt.s32.totalorder %s10, 2
    // Predicated region
    $region25: #{rnn_forward_packed.1} parent=5 // pred_check
      %p145 = pneg %p144
    $region26: #{rnn_forward_packed.1} parent=5 // pred_check_branch
      %147 = sbr.rel (%p145) target = $region28
    $region27: #{rnn_forward_packed.1} parent=5 // pred_region
      // Predicated region
      $region29: #{rnn_forward_packed.1} parent=27 // pred_check
        %p148 = pneg %p30
      $region30: #{rnn_forward_packed.1} parent=27 // pred_check_branch
        %150 = sbr.rel (%p148) target = $region32
      $region31: #{rnn_forward_packed.1} parent=27 // pred_region
        %s151 = smul.u32 4, %s10
        %p152 = scmp.lt.s32.totalorder %s151, 7
        %s153 = scalar_select %p152, %s151, 7
        %s154 = smul.addr %s153, 4
        %s155 = smul.addr %s154, 8
        %s156 = scalar_lea.vmem %s0, %s155
        %s157 = smul.u32 4, %s10
      $region32: #{rnn_forward_packed.1} parent=27 // pred_fallthru
        _
    $region28: #{rnn_forward_packed.1} parent=5 // pred_fallthru
      _
    %p158 = scmp.le.s32.totalorder 1, %s10
    %p159 = scmp.lt.s32.totalorder %s10, 3
    %p160 = pnand %p158, %p159
    %p161 = pneg %p160
    // Predicated region
    $region33: #{rnn_forward_packed.1} parent=5 // pred_check
      _
    $region34: #{rnn_forward_packed.1} parent=5 // pred_check_branch
      %163 = sbr.rel (%p160) target = $region36
    $region35: #{rnn_forward_packed.1} parent=5 // pred_region
      %s164 = ssub.s32 %s10, 1
      %s165 = smul.u32 4, %s15
      %p166 = scmp.lt.s32.totalorder %s165, 7
      %s167 = scalar_select %p166, %s165, 7
      %s168 = smul.addr %s167, 4
      %s169 = smul.addr %s168, 8
      %s170 = scalar_lea.vmem %s0, %s169
      %p171 = pneg %p36
      %p172 = pneg %p33
      %p173 = pneg %p57
      %p174 = pneg %p54
      %p175 = pneg %p78
      %p176 = pneg %p75
      %p177 = pneg %p99
      %p178 = pneg %p96
      %p179 = pneg %p120
      %p180 = pneg %p117
      %s181 = smul.u32 4, %s15
      %p182 = scmp.lt.s32.totalorder %s181, 7
      %s183 = scalar_select %p182, %s181, 7
      %s184 = smul.addr %s183, 4
      %s185 = smul.addr %s184, 8
      %s186 = scalar_lea.vmem %s0, %s185
      %s187 = smul.u32 4, %s15
      %p189 = scmp.eq.s32.totalorder %s15, 0
      // Predicated region
      $region37: #{rnn_forward_packed.1} parent=35 // pred_check
        %p190 = pneg %p189
      $region38: #{rnn_forward_packed.1} parent=35 // pred_check_branch
        %192 = sbr.rel (%p190) target = $region40
      $region39: #{rnn_forward_packed.1} parent=35 // pred_region
        %193 = vst [vmem:[#allocation2] sm:$0xff] 0.0
        %194 = vst [vmem:[#allocation3] sm:$0xff] 0.0
      $region40: #{rnn_forward_packed.1} parent=35 // pred_fallthru
        _
      %v195 = vld [vmem:[#allocation2] sm:$0xff]
      %v196 = vld [vmem:[#allocation3] sm:$0xff]
      %v197 = vld [vmem:[%s186] sm:$0xff]
      %v198 = vld [vmem:[%s186 + $0x8] sm:$0xff]
      %v199 = vld [vmem:[%s186 + $0x10] sm:$0xff]
      %v200 = vld [vmem:[%s186 + $0x18] sm:$0xff]
      %v201 = vpack.c.bf16 %v195, %v195
      %v202 = vld [vmem:[%s1] sm:$0xff]
      %v203 = vld [vmem:[%s1 + $0x8] sm:$0xff]
      %v204 = vld [vmem:[%s1 + $0x10] sm:$0xff]
      %v205 = vld [vmem:[%s1 + $0x18] sm:$0xff]
      %v206 = vld [vmem:[%s1 + $0x20] sm:$0xff]
      %v207 = vld [vmem:[%s1 + $0x28] sm:$0xff]
      %v208 = vld [vmem:[%s1 + $0x30] sm:$0xff]
      %v209 = vld [vmem:[%s1 + $0x38] sm:$0xff]
      %v210 = vld [vmem:[%s1 + $0x40] sm:$0xff]
      %v211 = vld [vmem:[%s1 + $0x48] sm:$0xff]
      %v212 = vld [vmem:[%s1 + $0x50] sm:$0xff]
      %v213 = vld [vmem:[%s1 + $0x58] sm:$0xff]
      %v214 = vld [vmem:[%s1 + $0x60] sm:$0xff]
      %v215 = vld [vmem:[%s1 + $0x68] sm:$0xff]
      %v216 = vld [vmem:[%s1 + $0x70] sm:$0xff]
      %v217 = vld [vmem:[%s1 + $0x78] sm:$0xff]
      %v218 = vld [vmem:[%s1 + $0x80] sm:$0xff]
      %v219 = vld [vmem:[%s1 + $0x88] sm:$0xff]
      %v220 = vld [vmem:[%s1 + $0x90] sm:$0xff]
      %v221 = vld [vmem:[%s1 + $0x98] sm:$0xff]
      %v222 = vld [vmem:[%s1 + $0xa0] sm:$0xff]
      %v223 = vld [vmem:[%s1 + $0xa8] sm:$0xff]
      %v224 = vld [vmem:[%s1 + $0xb0] sm:$0xff]
      %v225 = vld [vmem:[%s1 + $0xb8] sm:$0xff]
      %v226 = vld [vmem:[%s1 + $0xc0] sm:$0xff]
      %v227 = vld [vmem:[%s1 + $0xc8] sm:$0xff]
      %v228 = vld [vmem:[%s1 + $0xd0] sm:$0xff]
      %v229 = vld [vmem:[%s1 + $0xd8] sm:$0xff]
      %v230 = vld [vmem:[%s1 + $0xe0] sm:$0xff]
      %v231 = vld [vmem:[%s1 + $0xe8] sm:$0xff]
      %v232 = vld [vmem:[%s1 + $0xf0] sm:$0xff]
      %v233 = vld [vmem:[%s1 + $0xf8] sm:$0xff]
      %v266 = vunpack.c.l.b16 %v202
      %v267 = vunpack.c.h.b16 %v202
      %v268 = vunpack.c.l.b16 %v203
      %v269 = vunpack.c.h.b16 %v203
      %v270 = vunpack.c.l.b16 %v204
      %v271 = vunpack.c.h.b16 %v204
      %v272 = vunpack.c.l.b16 %v205
      %v273 = vunpack.c.h.b16 %v205
      %v274 = vunpack.c.l.b16 %v206
      %v275 = vunpack.c.h.b16 %v206
      %v276 = vunpack.c.l.b16 %v207
      %v277 = vunpack.c.h.b16 %v207
      %v278 = vunpack.c.l.b16 %v208
      %v279 = vunpack.c.h.b16 %v208
      %v280 = vunpack.c.l.b16 %v209
      %v281 = vunpack.c.h.b16 %v209
      %v282 = vunpack.c.l.b16 %v210
      %v283 = vunpack.c.h.b16 %v210
      %v284 = vunpack.c.l.b16 %v211
      %v285 = vunpack.c.h.b16 %v211
      %v286 = vunpack.c.l.b16 %v212
      %v287 = vunpack.c.h.b16 %v212
      %v288 = vunpack.c.l.b16 %v213
      %v289 = vunpack.c.h.b16 %v213
      %v290 = vunpack.c.l.b16 %v214
      %v291 = vunpack.c.h.b16 %v214
      %v292 = vunpack.c.l.b16 %v215
      %v293 = vunpack.c.h.b16 %v215
      %v294 = vunpack.c.l.b16 %v216
      %v295 = vunpack.c.h.b16 %v216
      %v296 = vunpack.c.l.b16 %v217
      %v297 = vunpack.c.h.b16 %v217
      %v298 = vunpack.c.l.b16 %v218
      %v299 = vunpack.c.h.b16 %v218
      %v300 = vunpack.c.l.b16 %v219
      %v301 = vunpack.c.h.b16 %v219
      %v302 = vunpack.c.l.b16 %v220
      %v303 = vunpack.c.h.b16 %v220
      %v304 = vunpack.c.l.b16 %v221
      %v305 = vunpack.c.h.b16 %v221
      %v306 = vunpack.c.l.b16 %v222
      %v307 = vunpack.c.h.b16 %v222
      %v308 = vunpack.c.l.b16 %v223
      %v309 = vunpack.c.h.b16 %v223
      %v310 = vunpack.c.l.b16 %v224
      %v311 = vunpack.c.h.b16 %v224
      %v312 = vunpack.c.l.b16 %v225
      %v313 = vunpack.c.h.b16 %v225
      %v314 = vunpack.c.l.b16 %v226
      %v315 = vunpack.c.h.b16 %v226
      %v316 = vunpack.c.l.b16 %v227
      %v317 = vunpack.c.h.b16 %v227
      %v318 = vunpack.c.l.b16 %v228
      %v319 = vunpack.c.h.b16 %v228
      %v320 = vunpack.c.l.b16 %v229
      %v321 = vunpack.c.h.b16 %v229
      %v322 = vunpack.c.l.b16 %v230
      %v323 = vunpack.c.h.b16 %v230
      %v324 = vunpack.c.l.b16 %v231
      %v325 = vunpack.c.h.b16 %v231
      %v326 = vunpack.c.l.b16 %v232
      %v327 = vunpack.c.h.b16 %v232
      %v328 = vunpack.c.l.b16 %v233
      %v329 = vunpack.c.h.b16 %v233
      %v330 = vpack.c.b16 %v270, %v266
      %v331 = vpack.c.b16 %v271, %v267
      %v332 = vpack.c.b16 %v272, %v268
      %v333 = vpack.c.b16 %v273, %v269
      %v334 = vpack.c.b16 %v278, %v274
      %v335 = vpack.c.b16 %v279, %v275
      %v336 = vpack.c.b16 %v280, %v276
      %v337 = vpack.c.b16 %v281, %v277
      %v338 = vpack.c.b16 %v286, %v282
      %v339 = vpack.c.b16 %v287, %v283
      %v340 = vpack.c.b16 %v288, %v284
      %v341 = vpack.c.b16 %v289, %v285
      %v342 = vpack.c.b16 %v294, %v290
      %v343 = vpack.c.b16 %v295, %v291
      %v344 = vpack.c.b16 %v296, %v292
      %v345 = vpack.c.b16 %v297, %v293
      %v346 = vpack.c.b16 %v302, %v298
      %v347 = vpack.c.b16 %v303, %v299
      %v348 = vpack.c.b16 %v304, %v300
      %v349 = vpack.c.b16 %v305, %v301
      %v350 = vpack.c.b16 %v310, %v306
      %v351 = vpack.c.b16 %v311, %v307
      %v352 = vpack.c.b16 %v312, %v308
      %v353 = vpack.c.b16 %v313, %v309
      %v354 = vpack.c.b16 %v318, %v314
      %v355 = vpack.c.b16 %v319, %v315
      %v356 = vpack.c.b16 %v320, %v316
      %v357 = vpack.c.b16 %v321, %v317
      %v358 = vpack.c.b16 %v326, %v322
      %v359 = vpack.c.b16 %v327, %v323
      %v360 = vpack.c.b16 %v328, %v324
      %v361 = vpack.c.b16 %v329, %v325
      %394 = vmatprep.subr.bf16.mxu0 %v331
      %395 = vmatpush1.bf16.msra.mxu0 %v330
      %396 = vmatprep.subr.bf16.mxu0 %v335
      %397 = vmatpush1.bf16.msra.mxu0 %v334
      %398 = vmatprep.subr.bf16.mxu0 %v339
      %399 = vmatpush1.bf16.msra.mxu0 %v338
      %400 = vmatprep.subr.bf16.mxu0 %v343
      %401 = vmatpush1.bf16.msra.mxu0 %v342
      %402 = vmatprep.subr.bf16.mxu0 %v347
      %403 = vmatpush1.bf16.msra.mxu0 %v346
      %404 = vmatprep.subr.bf16.mxu0 %v351
      %405 = vmatpush1.bf16.msra.mxu0 %v350
      %406 = vmatprep.subr.bf16.mxu0 %v355
      %407 = vmatpush1.bf16.msra.mxu0 %v354
      %408 = vmatprep.subr.bf16.mxu0 %v359
      %409 = vmatpush1.bf16.msra.mxu0 %v358
      %410 = vmatprep.subr.bf16.mxu0 0
      %411 = vmatpush1.bf16.msra.mxu0 0
      %412 = vmatprep.subr.bf16.mxu0 0
      %413 = vmatpush1.bf16.msra.mxu0 0
      %414 = vmatprep.subr.bf16.mxu0 0
      %415 = vmatpush1.bf16.msra.mxu0 0
      %416 = vmatprep.subr.bf16.mxu0 0
      %417 = vmatpush1.bf16.msra.mxu0 0
      %418 = vmatprep.subr.bf16.mxu0 0
      %419 = vmatpush1.bf16.msra.mxu0 0
      %420 = vmatprep.subr.bf16.mxu0 0
      %421 = vmatpush1.bf16.msra.mxu0 0
      %422 = vmatprep.subr.bf16.mxu0 0
      %423 = vmatpush1.bf16.msra.mxu0 0
      %424 = vmatprep.subr.bf16.mxu0 0
      %425 = vmatpush1.bf16.msra.mxu0 0
      %426 = vmatprep.mubr.bf16.mxu0 0
      %427 = vmatmul.mubr.bf16.gmra.mrb[0].mxu0 %v201
      %v428 = vpop.f32.mrb[0].mxu0
      %v429 = vadd.f32 0.0, %v428
      %v430 = vpop.f32.mrb[0].mxu0
      %v431 = vadd.f32 0.0, %v430
      %v432 = vpop.f32.mrb[0].mxu0
      %v433 = vpop.f32.mrb[0].mxu0
      %434 = vdwg.mxu0
      %435 = vmatprep.subr.bf16.mxu0 %v333
      %436 = vmatpush1.bf16.msra.mxu0 %v332
      %437 = vmatprep.subr.bf16.mxu0 %v337
      %438 = vmatpush1.bf16.msra.mxu0 %v336
      %439 = vmatprep.subr.bf16.mxu0 %v341
      %440 = vmatpush1.bf16.msra.mxu0 %v340
      %441 = vmatprep.subr.bf16.mxu0 %v345
      %442 = vmatpush1.bf16.msra.mxu0 %v344
      %443 = vmatprep.subr.bf16.mxu0 %v349
      %444 = vmatpush1.bf16.msra.mxu0 %v348
      %445 = vmatprep.subr.bf16.mxu0 %v353
      %446 = vmatpush1.bf16.msra.mxu0 %v352
      %447 = vmatprep.subr.bf16.mxu0 %v357
      %448 = vmatpush1.bf16.msra.mxu0 %v356
      %449 = vmatprep.subr.bf16.mxu0 %v361
      %450 = vmatpush1.bf16.msra.mxu0 %v360
      %451 = vmatprep.subr.bf16.mxu0 0
      %452 = vmatpush1.bf16.msra.mxu0 0
      %453 = vmatprep.subr.bf16.mxu0 0
      %454 = vmatpush1.bf16.msra.mxu0 0
      %455 = vmatprep.subr.bf16.mxu0 0
      %456 = vmatpush1.bf16.msra.mxu0 0
      %457 = vmatprep.subr.bf16.mxu0 0
      %458 = vmatpush1.bf16.msra.mxu0 0
      %459 = vmatprep.subr.bf16.mxu0 0
      %460 = vmatpush1.bf16.msra.mxu0 0
      %461 = vmatprep.subr.bf16.mxu0 0
      %462 = vmatpush1.bf16.msra.mxu0 0
      %463 = vmatprep.subr.bf16.mxu0 0
      %464 = vmatpush1.bf16.msra.mxu0 0
      %465 = vmatprep.subr.bf16.mxu0 0
      %466 = vmatpush1.bf16.msra.mxu0 0
      %467 = vmatprep.mubr.bf16.mxu0 0
      %468 = vmatmul.mubr.bf16.gmra.mrb[0].mxu0 %v201
      %v469 = vpop.f32.mrb[0].mxu0
      %v470 = vadd.f32 0.0, %v469
      %v471 = vpop.f32.mrb[0].mxu0
      %v472 = vadd.f32 0.0, %v471
      %v473 = vpop.f32.mrb[0].mxu0
      %v474 = vpop.f32.mrb[0].mxu0
      %475 = vdwg.mxu0
      %v476 = vadd.f32 %v197, %v429
      %v477 = vadd.f32 %v198, %v431
      %v478 = vadd.f32 %v199, %v470
      %v479 = vadd.f32 %v200, %v472
      %v480 = vxor.u32 %v476, 2147483648
      %v481 = vmul.f32 %v480, 1.442695
      %v482 = vpow.pop %v481
      %v483 = vadd.f32 %v482, 1.0
      %v484 = vrcp.pop %v483
      %v485 = vmul.f32 1.0, %v484
      %v486 = vxor.u32 %v477, 2147483648
      %v487 = vmul.f32 %v486, 1.442695
      %v488 = vpow.pop %v487
      %v489 = vadd.f32 %v488, 1.0
      %v490 = vrcp.pop %v489
      %v491 = vmul.f32 1.0, %v490
      %v492 = vtanh.pop %v478
      %v493 = vxor.u32 %v479, 2147483648
      %v494 = vmul.f32 %v493, 1.442695
      %v495 = vpow.pop %v494
      %v496 = vadd.f32 %v495, 1.0
      %v497 = vrcp.pop %v496
      %v498 = vmul.f32 1.0, %v497
      %v499 = vmul.f32 %v491, %v196
      %v500 = vmul.f32 %v485, %v492
      %v501 = vadd.f32 %v499, %v500
      %v502 = vtanh.pop %v501
      %v503 = vmul.f32 %v498, %v502
      %s504 = scalar_lea.vmem %s186, 32
      %v505 = vld [vmem:[%s504] sm:$0xff]
      %v506 = vld [vmem:[%s504 + $0x8] sm:$0xff]
      %v507 = vld [vmem:[%s504 + $0x10] sm:$0xff]
      %v508 = vld [vmem:[%s504 + $0x18] sm:$0xff]
      %v509 = vpack.c.bf16 %v503, %v503
      %510 = vmatprep.subr.bf16.mxu0 %v331
      %511 = vmatpush1.bf16.msra.mxu0 %v330
      %512 = vmatprep.subr.bf16.mxu0 %v335
      %513 = vmatpush1.bf16.msra.mxu0 %v334
      %514 = vmatprep.subr.bf16.mxu0 %v339
      %515 = vmatpush1.bf16.msra.mxu0 %v338
      %516 = vmatprep.subr.bf16.mxu0 %v343
      %517 = vmatpush1.bf16.msra.mxu0 %v342
      %518 = vmatprep.subr.bf16.mxu0 %v347
      %519 = vmatpush1.bf16.msra.mxu0 %v346
      %520 = vmatprep.subr.bf16.mxu0 %v351
      %521 = vmatpush1.bf16.msra.mxu0 %v350
      %522 = vmatprep.subr.bf16.mxu0 %v355
      %523 = vmatpush1.bf16.msra.mxu0 %v354
      %524 = vmatprep.subr.bf16.mxu0 %v359
      %525 = vmatpush1.bf16.msra.mxu0 %v358
      %526 = vmatprep.subr.bf16.mxu0 0
      %527 = vmatpush1.bf16.msra.mxu0 0
      %528 = vmatprep.subr.bf16.mxu0 0
      %529 = vmatpush1.bf16.msra.mxu0 0
      %530 = vmatprep.subr.bf16.mxu0 0
      %531 = vmatpush1.bf16.msra.mxu0 0
      %532 = vmatprep.subr.bf16.mxu0 0
      %533 = vmatpush1.bf16.msra.mxu0 0
      %534 = vmatprep.subr.bf16.mxu0 0
      %535 = vmatpush1.bf16.msra.mxu0 0
      %536 = vmatprep.subr.bf16.mxu0 0
      %537 = vmatpush1.bf16.msra.mxu0 0
      %538 = vmatprep.subr.bf16.mxu0 0
      %539 = vmatpush1.bf16.msra.mxu0 0
      %540 = vmatprep.subr.bf16.mxu0 0
      %541 = vmatpush1.bf16.msra.mxu0 0
      %542 = vmatprep.mubr.bf16.mxu0 0
      %543 = vmatmul.mubr.bf16.gmra.mrb[0].mxu0 %v509
      %v544 = vpop.f32.mrb[0].mxu0
      %v545 = vadd.f32 0.0, %v544
      %v546 = vpop.f32.mrb[0].mxu0
      %v547 = vadd.f32 0.0, %v546
      %v548 = vpop.f32.mrb[0].mxu0
      %v549 = vpop.f32.mrb[0].mxu0
      %550 = vdwg.mxu0
      %551 = vmatprep.subr.bf16.mxu0 %v333
      %552 = vmatpush1.bf16.msra.mxu0 %v332
      %553 = vmatprep.subr.bf16.mxu0 %v337
      %554 = vmatpush1.bf16.msra.mxu0 %v336
      %555 = vmatprep.subr.bf16.mxu0 %v341
      %556 = vmatpush1.bf16.msra.mxu0 %v340
      %557 = vmatprep.subr.bf16.mxu0 %v345
      %558 = vmatpush1.bf16.msra.mxu0 %v344
      %559 = vmatprep.subr.bf16.mxu0 %v349
      %560 = vmatpush1.bf16.msra.mxu0 %v348
      %561 = vmatprep.subr.bf16.mxu0 %v353
      %562 = vmatpush1.bf16.msra.mxu0 %v352
      %563 = vmatprep.subr.bf16.mxu0 %v357
      %564 = vmatpush1.bf16.msra.mxu0 %v356
      %565 = vmatprep.subr.bf16.mxu0 %v361
      %566 = vmatpush1.bf16.msra.mxu0 %v360
      %567 = vmatprep.subr.bf16.mxu0 0
      %568 = vmatpush1.bf16.msra.mxu0 0
      %569 = vmatprep.subr.bf16.mxu0 0
      %570 = vmatpush1.bf16.msra.mxu0 0
      %571 = vmatprep.subr.bf16.mxu0 0
      %572 = vmatpush1.bf16.msra.mxu0 0
      %573 = vmatprep.subr.bf16.mxu0 0
      %574 = vmatpush1.bf16.msra.mxu0 0
      %575 = vmatprep.subr.bf16.mxu0 0
      %576 = vmatpush1.bf16.msra.mxu0 0
      %577 = vmatprep.subr.bf16.mxu0 0
      %578 = vmatpush1.bf16.msra.mxu0 0
      %579 = vmatprep.subr.bf16.mxu0 0
      %580 = vmatpush1.bf16.msra.mxu0 0
      %581 = vmatprep.subr.bf16.mxu0 0
      %582 = vmatpush1.bf16.msra.mxu0 0
      %583 = vmatprep.mubr.bf16.mxu0 0
      %584 = vmatmul.mubr.bf16.gmra.mrb[0].mxu0 %v509
      %v585 = vpop.f32.mrb[0].mxu0
      %v586 = vadd.f32 0.0, %v585
      %v587 = vpop.f32.mrb[0].mxu0
      %v588 = vadd.f32 0.0, %v587
      %v589 = vpop.f32.mrb[0].mxu0
      %v590 = vpop.f32.mrb[0].mxu0
      %591 = vdwg.mxu0
      %v592 = vadd.f32 %v505, %v545
      %v593 = vadd.f32 %v506, %v547
      %v594 = vadd.f32 %v507, %v586
      %v595 = vadd.f32 %v508, %v588
      %v596 = vxor.u32 %v592, 2147483648
      %v597 = vmul.f32 %v596, 1.442695
      %v598 = vpow.pop %v597
      %v599 = vadd.f32 %v598, 1.0
      %v600 = vrcp.pop %v599
      %v601 = vmul.f32 1.0, %v600
      %v602 = vxor.u32 %v593, 2147483648
      %v603 = vmul.f32 %v602, 1.442695
      %v604 = vpow.pop %v603
      %v605 = vadd.f32 %v604, 1.0
      %v606 = vrcp.pop %v605
      %v607 = vmul.f32 1.0, %v606
      %v608 = vtanh.pop %v594
      %v609 = vxor.u32 %v595, 2147483648
      %v610 = vmul.f32 %v609, 1.442695
      %v611 = vpow.pop %v610
      %v612 = vadd.f32 %v611, 1.0
      %v613 = vrcp.pop %v612
      %v614 = vmul.f32 1.0, %v613
      %v615 = vmul.f32 %v607, %v501
      %v616 = vmul.f32 %v601, %v608
      %v617 = vadd.f32 %v615, %v616
      %v618 = vtanh.pop %v617
      %v619 = vmul.f32 %v614, %v618
      %s620 = scalar_lea.vmem %s186, 64
      %v621 = vld [vmem:[%s620] sm:$0xff]
      %v622 = vld [vmem:[%s620 + $0x8] sm:$0xff]
      %v623 = vld [vmem:[%s620 + $0x10] sm:$0xff]
      %v624 = vld [vmem:[%s620 + $0x18] sm:$0xff]
      %v625 = vpack.c.bf16 %v619, %v619
      %626 = vmatprep.subr.bf16.mxu0 %v331
      %627 = vmatpush1.bf16.msra.mxu0 %v330
      %628 = vmatprep.subr.bf16.mxu0 %v335
      %629 = vmatpush1.bf16.msra.mxu0 %v334
      %630 = vmatprep.subr.bf16.mxu0 %v339
      %631 = vmatpush1.bf16.msra.mxu0 %v338
      %632 = vmatprep.subr.bf16.mxu0 %v343
      %633 = vmatpush1.bf16.msra.mxu0 %v342
      %634 = vmatprep.subr.bf16.mxu0 %v347
      %635 = vmatpush1.bf16.msra.mxu0 %v346
      %636 = vmatprep.subr.bf16.mxu0 %v351
      %637 = vmatpush1.bf16.msra.mxu0 %v350
      %638 = vmatprep.subr.bf16.mxu0 %v355
      %639 = vmatpush1.bf16.msra.mxu0 %v354
      %640 = vmatprep.subr.bf16.mxu0 %v359
      %641 = vmatpush1.bf16.msra.mxu0 %v358
      %642 = vmatprep.subr.bf16.mxu0 0
      %643 = vmatpush1.bf16.msra.mxu0 0
      %644 = vmatprep.subr.bf16.mxu0 0
      %645 = vmatpush1.bf16.msra.mxu0 0
      %646 = vmatprep.subr.bf16.mxu0 0
      %647 = vmatpush1.bf16.msra.mxu0 0
      %648 = vmatprep.subr.bf16.mxu0 0
      %649 = vmatpush1.bf16.msra.mxu0 0
      %650 = vmatprep.subr.bf16.mxu0 0
      %651 = vmatpush1.bf16.msra.mxu0 0
      %652 = vmatprep.subr.bf16.mxu0 0
      %653 = vmatpush1.bf16.msra.mxu0 0
      %654 = vmatprep.subr.bf16.mxu0 0
      %655 = vmatpush1.bf16.msra.mxu0 0
      %656 = vmatprep.subr.bf16.mxu0 0
      %657 = vmatpush1.bf16.msra.mxu0 0
      %658 = vmatprep.mubr.bf16.mxu0 0
      %659 = vmatmul.mubr.bf16.gmra.mrb[0].mxu0 %v625
      %v660 = vpop.f32.mrb[0].mxu0
      %v661 = vadd.f32 0.0, %v660
      %v662 = vpop.f32.mrb[0].mxu0
      %v663 = vadd.f32 0.0, %v662
      %v664 = vpop.f32.mrb[0].mxu0
      %v665 = vpop.f32.mrb[0].mxu0
      %666 = vdwg.mxu0
      %667 = vmatprep.subr.bf16.mxu0 %v333
      %668 = vmatpush1.bf16.msra.mxu0 %v332
      %669 = vmatprep.subr.bf16.mxu0 %v337
      %670 = vmatpush1.bf16.msra.mxu0 %v336
      %671 = vmatprep.subr.bf16.mxu0 %v341
      %672 = vmatpush1.bf16.msra.mxu0 %v340
      %673 = vmatprep.subr.bf16.mxu0 %v345
      %674 = vmatpush1.bf16.msra.mxu0 %v344
      %675 = vmatprep.subr.bf16.mxu0 %v349
      %676 = vmatpush1.bf16.msra.mxu0 %v348
      %677 = vmatprep.subr.bf16.mxu0 %v353
      %678 = vmatpush1.bf16.msra.mxu0 %v352
      %679 = vmatprep.subr.bf16.mxu0 %v357
      %680 = vmatpush1.bf16.msra.mxu0 %v356
      %681 = vmatprep.subr.bf16.mxu0 %v361
      %682 = vmatpush1.bf16.msra.mxu0 %v360
      %683 = vmatprep.subr.bf16.mxu0 0
      %684 = vmatpush1.bf16.msra.mxu0 0
      %685 = vmatprep.subr.bf16.mxu0 0
      %686 = vmatpush1.bf16.msra.mxu0 0
      %687 = vmatprep.subr.bf16.mxu0 0
      %688 = vmatpush1.bf16.msra.mxu0 0
      %689 = vmatprep.subr.bf16.mxu0 0
      %690 = vmatpush1.bf16.msra.mxu0 0
      %691 = vmatprep.subr.bf16.mxu0 0
      %692 = vmatpush1.bf16.msra.mxu0 0
      %693 = vmatprep.subr.bf16.mxu0 0
      %694 = vmatpush1.bf16.msra.mxu0 0
      %695 = vmatprep.subr.bf16.mxu0 0
      %696 = vmatpush1.bf16.msra.mxu0 0
      %697 = vmatprep.subr.bf16.mxu0 0
      %698 = vmatpush1.bf16.msra.mxu0 0
      %699 = vmatprep.mubr.bf16.mxu0 0
      %700 = vmatmul.mubr.bf16.gmra.mrb[0].mxu0 %v625
      %v701 = vpop.f32.mrb[0].mxu0
      %v702 = vadd.f32 0.0, %v701
      %v703 = vpop.f32.mrb[0].mxu0
      %v704 = vadd.f32 0.0, %v703
      %v705 = vpop.f32.mrb[0].mxu0
      %v706 = vpop.f32.mrb[0].mxu0
      %707 = vdwg.mxu0
      %v708 = vadd.f32 %v621, %v661
      %v709 = vadd.f32 %v622, %v663
      %v710 = vadd.f32 %v623, %v702
      %v711 = vadd.f32 %v624, %v704
      %v712 = vxor.u32 %v708, 2147483648
      %v713 = vmul.f32 %v712, 1.442695
      %v714 = vpow.pop %v713
      %v715 = vadd.f32 %v714, 1.0
      %v716 = vrcp.pop %v715
      %v717 = vmul.f32 1.0, %v716
      %v718 = vxor.u32 %v709, 2147483648
      %v719 = vmul.f32 %v718, 1.442695
      %v720 = vpow.pop %v719
      %v721 = vadd.f32 %v720, 1.0
      %v722 = vrcp.pop %v721
      %v723 = vmul.f32 1.0, %v722
      %v724 = vtanh.pop %v710
      %v725 = vxor.u32 %v711, 2147483648
      %v726 = vmul.f32 %v725, 1.442695
      %v727 = vpow.pop %v726
      %v728 = vadd.f32 %v727, 1.0
      %v729 = vrcp.pop %v728
      %v730 = vmul.f32 1.0, %v729
      %v731 = vmul.f32 %v723, %v617
      %v732 = vmul.f32 %v717, %v724
      %v733 = vadd.f32 %v731, %v732
      %v734 = vtanh.pop %v733
      %v735 = vmul.f32 %v730, %v734
      %s736 = scalar_lea.vmem %s186, 96
      %v737 = vld [vmem:[%s736] sm:$0xff]
      %v738 = vld [vmem:[%s736 + $0x8] sm:$0xff]
      %v739 = vld [vmem:[%s736 + $0x10] sm:$0xff]
      %v740 = vld [vmem:[%s736 + $0x18] sm:$0xff]
      %v741 = vpack.c.bf16 %v735, %v735
      %742 = vmatprep.subr.bf16.mxu0 %v331
      %743 = vmatpush1.bf16.msra.mxu0 %v330
      %744 = vmatprep.subr.bf16.mxu0 %v335
      %745 = vmatpush1.bf16.msra.mxu0 %v334
      %746 = vmatprep.subr.bf16.mxu0 %v339
      %747 = vmatpush1.bf16.msra.mxu0 %v338
      %748 = vmatprep.subr.bf16.mxu0 %v343
      %749 = vmatpush1.bf16.msra.mxu0 %v342
      %750 = vmatprep.subr.bf16.mxu0 %v347
      %751 = vmatpush1.bf16.msra.mxu0 %v346
      %752 = vmatprep.subr.bf16.mxu0 %v351
      %753 = vmatpush1.bf16.msra.mxu0 %v350
      %754 = vmatprep.subr.bf16.mxu0 %v355
      %755 = vmatpush1.bf16.msra.mxu0 %v354
      %756 = vmatprep.subr.bf16.mxu0 %v359
      %757 = vmatpush1.bf16.msra.mxu0 %v358
      %758 = vmatprep.subr.bf16.mxu0 0
      %759 = vmatpush1.bf16.msra.mxu0 0
      %760 = vmatprep.subr.bf16.mxu0 0
      %761 = vmatpush1.bf16.msra.mxu0 0
      %762 = vmatprep.subr.bf16.mxu0 0
      %763 = vmatpush1.bf16.msra.mxu0 0
      %764 = vmatprep.subr.bf16.mxu0 0
      %765 = vmatpush1.bf16.msra.mxu0 0
      %766 = vmatprep.subr.bf16.mxu0 0
      %767 = vmatpush1.bf16.msra.mxu0 0
      %768 = vmatprep.subr.bf16.mxu0 0
      %769 = vmatpush1.bf16.msra.mxu0 0
      %770 = vmatprep.subr.bf16.mxu0 0
      %771 = vmatpush1.bf16.msra.mxu0 0
      %772 = vmatprep.subr.bf16.mxu0 0
      %773 = vmatpush1.bf16.msra.mxu0 0
      %774 = vmatprep.mubr.bf16.mxu0 0
      %775 = vmatmul.mubr.bf16.gmra.mrb[0].mxu0 %v741
      %v776 = vpop.f32.mrb[0].mxu0
      %v777 = vadd.f32 0.0, %v776
      %v778 = vpop.f32.mrb[0].mxu0
      %v779 = vadd.f32 0.0, %v778
      %v780 = vpop.f32.mrb[0].mxu0
      %v781 = vpop.f32.mrb[0].mxu0
      %782 = vdwg.mxu0
      %783 = vmatprep.subr.bf16.mxu0 %v333
      %784 = vmatpush1.bf16.msra.mxu0 %v332
      %785 = vmatprep.subr.bf16.mxu0 %v337
      %786 = vmatpush1.bf16.msra.mxu0 %v336
      %787 = vmatprep.subr.bf16.mxu0 %v341
      %788 = vmatpush1.bf16.msra.mxu0 %v340
      %789 = vmatprep.subr.bf16.mxu0 %v345
      %790 = vmatpush1.bf16.msra.mxu0 %v344
      %791 = vmatprep.subr.bf16.mxu0 %v349
      %792 = vmatpush1.bf16.msra.mxu0 %v348
      %793 = vmatprep.subr.bf16.mxu0 %v353
      %794 = vmatpush1.bf16.msra.mxu0 %v352
      %795 = vmatprep.subr.bf16.mxu0 %v357
      %796 = vmatpush1.bf16.msra.mxu0 %v356
      %797 = vmatprep.subr.bf16.mxu0 %v361
      %798 = vmatpush1.bf16.msra.mxu0 %v360
      %799 = vmatprep.subr.bf16.mxu0 0
      %800 = vmatpush1.bf16.msra.mxu0 0
      %801 = vmatprep.subr.bf16.mxu0 0
      %802 = vmatpush1.bf16.msra.mxu0 0
      %803 = vmatprep.subr.bf16.mxu0 0
      %804 = vmatpush1.bf16.msra.mxu0 0
      %805 = vmatprep.subr.bf16.mxu0 0
      %806 = vmatpush1.bf16.msra.mxu0 0
      %807 = vmatprep.subr.bf16.mxu0 0
      %808 = vmatpush1.bf16.msra.mxu0 0
      %809 = vmatprep.subr.bf16.mxu0 0
      %810 = vmatpush1.bf16.msra.mxu0 0
      %811 = vmatprep.subr.bf16.mxu0 0
      %812 = vmatpush1.bf16.msra.mxu0 0
      %813 = vmatprep.subr.bf16.mxu0 0
      %814 = vmatpush1.bf16.msra.mxu0 0
      %815 = vmatprep.mubr.bf16.mxu0 0
      %816 = vmatmul.mubr.bf16.gmra.mrb[0].mxu0 %v741
      %v817 = vpop.f32.mrb[0].mxu0
      %v818 = vadd.f32 0.0, %v817
      %v819 = vpop.f32.mrb[0].mxu0
      %v820 = vadd.f32 0.0, %v819
      %v821 = vpop.f32.mrb[0].mxu0
      %v822 = vpop.f32.mrb[0].mxu0
      %823 = vdwg.mxu0
      %v824 = vadd.f32 %v737, %v777
      %v825 = vadd.f32 %v738, %v779
      %v826 = vadd.f32 %v739, %v818
      %v827 = vadd.f32 %v740, %v820
      %v828 = vxor.u32 %v824, 2147483648
      %v829 = vmul.f32 %v828, 1.442695
      %v830 = vpow.pop %v829
      %v831 = vadd.f32 %v830, 1.0
      %v832 = vrcp.pop %v831
      %v833 = vmul.f32 1.0, %v832
      %v834 = vxor.u32 %v825, 2147483648
      %v835 = vmul.f32 %v834, 1.442695
      %v836 = vpow.pop %v835
      %v837 = vadd.f32 %v836, 1.0
      %v838 = vrcp.pop %v837
      %v839 = vmul.f32 1.0, %v838
      %v840 = vtanh.pop %v826
      %v841 = vxor.u32 %v827, 2147483648
      %v842 = vmul.f32 %v841, 1.442695
      %v843 = vpow.pop %v842
      %v844 = vadd.f32 %v843, 1.0
      %v845 = vrcp.pop %v844
      %v846 = vmul.f32 1.0, %v845
      %v847 = vmul.f32 %v839, %v733
      %v848 = vmul.f32 %v833, %v840
      %v849 = vadd.f32 %v847, %v848
      %v850 = vtanh.pop %v849
      %v851 = vmul.f32 %v846, %v850
      %852 = vst [vmem:[#allocation2] sm:$0xff] %v851
      %853 = vst [vmem:[#allocation3] sm:$0xff] %v849
      %p854 = scmp.eq.s32.totalorder %s15, 1
      // Predicated region
      $region41: #{rnn_forward_packed.1} parent=35 // pred_check
        %p855 = pneg %p854
      $region42: #{rnn_forward_packed.1} parent=35 // pred_check_branch
        %857 = sbr.rel (%p855) target = $region44
      $region43: #{rnn_forward_packed.1} parent=35 // pred_region
        %v858 = vld [vmem:[%s2] sm:$0xff]
        %v859 = vld [vmem:[%s2 + $0x8] sm:$0xff]
        %v860 = vld [vmem:[%s2 + $0x10] sm:$0xff]
        %v861 = vld [vmem:[%s2 + $0x18] sm:$0xff]
        %v862 = vld [vmem:[%s2 + $0x20] sm:$0xff]
        %v863 = vld [vmem:[%s2 + $0x28] sm:$0xff]
        %v864 = vld [vmem:[%s2 + $0x30] sm:$0xff]
        %v865 = vld [vmem:[%s2 + $0x38] sm:$0xff]
        %v866 = vld [vmem:[%s2 + $0x40] sm:$0xff]
        %v867 = vld [vmem:[%s2 + $0x48] sm:$0xff]
        %v868 = vld [vmem:[%s2 + $0x50] sm:$0xff]
        %v869 = vld [vmem:[%s2 + $0x58] sm:$0xff]
        %v870 = vld [vmem:[%s2 + $0x60] sm:$0xff]
        %v871 = vld [vmem:[%s2 + $0x68] sm:$0xff]
        %v872 = vld [vmem:[%s2 + $0x70] sm:$0xff]
        %v873 = vld [vmem:[%s2 + $0x78] sm:$0xff]
        %v874 = vld [vmem:[%s3] sm:$0x1]
        %v876 = vlaneseq
        %v877 = vshrl.u32 %v876, 7
        %v878 = vsub.s32 0, %v877
        %v879 = vrot.slane %v874, %v878
        %881 = vmatprep.subr.mxu0 0.0
        %882 = vmatpush1.msra.mxu0 %v858
        %883 = vmatprep.subr.mxu0 0.0
        %884 = vmatpush1.msra.mxu0 %v859
        %885 = vmatprep.subr.mxu0 0.0
        %886 = vmatpush1.msra.mxu0 %v860
        %887 = vmatprep.subr.mxu0 0.0
        %888 = vmatpush1.msra.mxu0 %v861
        %889 = vmatprep.subr.mxu0 0.0
        %890 = vmatpush1.msra.mxu0 %v862
        %891 = vmatprep.subr.mxu0 0.0
        %892 = vmatpush1.msra.mxu0 %v863
        %893 = vmatprep.subr.mxu0 0.0
        %894 = vmatpush1.msra.mxu0 %v864
        %895 = vmatprep.subr.mxu0 0.0
        %896 = vmatpush1.msra.mxu0 %v865
        %897 = vmatprep.subr.mxu0 0.0
        %898 = vmatpush1.msra.mxu0 %v866
        %899 = vmatprep.subr.mxu0 0.0
        %900 = vmatpush1.msra.mxu0 %v867
        %901 = vmatprep.subr.mxu0 0.0
        %902 = vmatpush1.msra.mxu0 %v868
        %903 = vmatprep.subr.mxu0 0.0
        %904 = vmatpush1.msra.mxu0 %v869
        %905 = vmatprep.subr.mxu0 0.0
        %906 = vmatpush1.msra.mxu0 %v870
        %907 = vmatprep.subr.mxu0 0.0
        %908 = vmatpush1.msra.mxu0 %v871
        %909 = vmatprep.subr.mxu0 0.0
        %910 = vmatpush1.msra.mxu0 %v872
        %911 = vmatprep.subr.mxu0 0.0
        %912 = vmatpush1.msra.mxu0 %v873
        %913 = vmatprep.subr.mxu0 0.0
        %914 = vmatpush1.msra.mxu0 0.0
        %915 = vmatprep.subr.mxu0 0.0
        %916 = vmatpush1.msra.mxu0 0.0
        %917 = vmatprep.subr.mxu0 0.0
        %918 = vmatpush1.msra.mxu0 0.0
        %919 = vmatprep.subr.mxu0 0.0
        %920 = vmatpush1.msra.mxu0 0.0
        %921 = vmatprep.subr.mxu0 0.0
        %922 = vmatpush1.msra.mxu0 0.0
        %923 = vmatprep.subr.mxu0 0.0
        %924 = vmatpush1.msra.mxu0 0.0
        %925 = vmatprep.subr.mxu0 0.0
        %926 = vmatpush1.msra.mxu0 0.0
        %927 = vmatprep.subr.mxu0 0.0
        %928 = vmatpush1.msra.mxu0 0.0
        %929 = vmatprep.subr.mxu0 0.0
        %930 = vmatpush1.msra.mxu0 0.0
        %931 = vmatprep.subr.mxu0 0.0
        %932 = vmatpush1.msra.mxu0 0.0
        %933 = vmatprep.subr.mxu0 0.0
        %934 = vmatpush1.msra.mxu0 0.0
        %935 = vmatprep.subr.mxu0 0.0
        %936 = vmatpush1.msra.mxu0 0.0
        %937 = vmatprep.subr.mxu0 0.0
        %938 = vmatpush1.msra.mxu0 0.0
        %939 = vmatprep.subr.mxu0 0.0
        %940 = vmatpush1.msra.mxu0 0.0
        %941 = vmatprep.subr.mxu0 0.0
        %942 = vmatpush1.msra.mxu0 0.0
        %943 = vmatprep.subr.mxu0 0.0
        %944 = vmatpush1.msra.mxu0 0.0
        %945 = vmatprep.mubr.f32.mxu0 0.0
        %946 = vmatmul.mubr.f32.gmra.mrb[0].mxu0 %v851
        %v947 = vpop.f32.mrb[0].mxu0
        %v948 = vadd.f32 %v879, %v947
        %v949 = vpop.f32.mrb[0].mxu0
        %950 = vdwg.mxu0
        %951 = vst [vmem:[%s4] sm:$0xff] %v948
      $region44: #{rnn_forward_packed.1} parent=35 // pred_fallthru
        _
      // Predicated region
      $region45: #{rnn_forward_packed.1} parent=35 // pred_check
        %p952 = pneg %p117
      $region46: #{rnn_forward_packed.1} parent=35 // pred_check_branch
        %954 = sbr.rel (%p952) target = $region48
      $region47: #{rnn_forward_packed.1} parent=35 // pred_region
        _
      $region48: #{rnn_forward_packed.1} parent=35 // pred_fallthru
        _
      // Predicated region
      $region49: #{rnn_forward_packed.1} parent=35 // pred_check
        %p955 = pneg %p117
      $region50: #{rnn_forward_packed.1} parent=35 // pred_check_branch
        %957 = sbr.rel (%p955) target = $region52
      $region51: #{rnn_forward_packed.1} parent=35 // pred_region
        _
      $region52: #{rnn_forward_packed.1} parent=35 // pred_fallthru
        _
    $region36: #{rnn_forward_packed.1} parent=5 // pred_fallthru
      _
    %p958 = scmp.le.s32.totalorder 2, %s10
    // Predicated region
    $region53: #{rnn_forward_packed.1} parent=5 // pred_check
      %p959 = pneg %p958
    $region54: #{rnn_forward_packed.1} parent=5 // pred_check_branch
      %961 = sbr.rel (%p959) target = $region56
    $region55: #{rnn_forward_packed.1} parent=5 // pred_region
      %s962 = ssub.s32 %s10, 2
    $region56: #{rnn_forward_packed.1} parent=5 // pred_fallthru
      _
  $region6: #{rnn_forward_packed.1} parent=0 // loop_footer
    %s14 = sadd.s32 1, %s10
  $region7: #{rnn_forward_packed.1} parent=0 // loop_footer_branch
    %9 = sbr.rel target = $region3
  $region8: #{rnn_forward_packed.1} parent=0 // loop_exit
    _

</llo_original>
